<compile_context>
chip_gen: v7x
topology: tpu7x:2x2x1
jax: 0.10.0
libtpu: 0.0.40
codegen_flags: <defaults>
</compile_context>

<pallas_src>
import jax
import jax.numpy as jnp
import numpy as np
from jax import lax
from jax.experimental import pallas as pl
from jax.experimental.pallas import tpu as pltpu


def _pick_head_block(num_heads, head_dim):
    """Largest head-block HB dividing H with HB*D <= 512, preferring
    lane-aligned (HB*D % 128 == 0) q/k/v slabs."""
    divs = [hb for hb in range(1, num_heads + 1)
            if num_heads % hb == 0 and hb * head_dim <= 512]
    if not divs:
        return 1
    aligned = [hb for hb in divs if (hb * head_dim) % 128 == 0]
    return max(aligned) if aligned else max(divs)


def _make_attention_kernel(N, C, D, HB, compute_dtype, approx_recip):
    """One grid step = one (batch, head-block) pair; HB heads per step."""
    QW = HB * D  # width of each q / k / v slab for this head-block

    def kernel(x_ref, wqkv_ref, wproj_ref, bias_ref, out_ref):
        hg = pl.program_id(1)

        # Fused QKV projection for HB heads at once (deep-K contraction):
        # (N, C) @ (C, 3*HB*D) -> (N, 3*HB*D), f32 MXU accumulation.
        qkv = jnp.dot(x_ref[...], wqkv_ref[hg],
                      preferred_element_type=jnp.float32).astype(compute_dtype)
        q_all = qkv[:, :QW]            # softmax scale already folded into Wq
        k_all = qkv[:, QW:2 * QW]
        v_all = qkv[:, 2 * QW:]

        # Per-head scaled-dot-product attention.
        o_slabs = []
        for hb in range(HB):
            q = q_all[:, hb * D:(hb + 1) * D]
            k = k_all[:, hb * D:(hb + 1) * D]
            v = v_all[:, hb * D:(hb + 1) * D]
            # scores = q @ k^T (contract head dim; no explicit transpose).
            s = lax.dot_general(q, k, (((1,), (1,)), ((), ())),
                                preferred_element_type=jnp.float32)   # (N, N)
            s = s - jnp.max(s, axis=-1, keepdims=True)
            p = jnp.exp(s)                                            # f32
            denom = jnp.sum(p, axis=-1, keepdims=True)                # (N, 1)
            # Deferred normalization: scale the (N, D) output, not (N, N) p.
            # NOTE: pl.reciprocal(approx=True) deviates ~1e-3 relative from an
            # exact softmax; pass approx_recip=False for bit-tighter results.
            o = jnp.dot(p.astype(compute_dtype), v,
                        preferred_element_type=jnp.float32)           # (N, D)
            o = o * pl.reciprocal(denom, approx=approx_recip)
            o_slabs.append(o.astype(compute_dtype))
        o_block = o_slabs[0] if HB == 1 else jnp.concatenate(o_slabs, axis=-1)

        # This head-block's projection contribution (K = HB*D deep matmul).
        contrib = jnp.dot(o_block, wproj_ref[hg],
                          preferred_element_type=jnp.float32)         # (N, C)

        # Accumulate head-blocks into the VMEM-resident f32 output block.
        @pl.when(hg == 0)
        def _():
            out_ref[...] = contrib + bias_ref[...]

        @pl.when(hg > 0)
        def _():
            out_ref[...] += contrib

    return kernel


def attention_forward(x, params, num_heads, *, compute_dtype=jnp.bfloat16,
                      head_block=None, approx_recip=True):
    """Pallas forward of the Attention module.  x: (B, N, C) float32."""
    B, N, C = x.shape
    H = num_heads
    assert C % H == 0, "dim must be divisible by num_heads"
    D = C // H
    scale = float(D) ** -0.5           # == 1/sqrt(d_k)

    HB = head_block if head_block is not None else _pick_head_block(H, D)
    assert H % HB == 0
    HG = H // HB
    QW = HB * D

    # --- pre-pack weights per head-block (cheap one-time wrapper-side ops) ---
    w_qkv = params["w_qkv"]                           # (C, 3C) = [q | k | v]
    wq = w_qkv[:, :C] * scale                         # fold scale into Wq
    wk = w_qkv[:, C:2 * C]
    wv = w_qkv[:, 2 * C:]

    def blockify(w):                                  # (C, C) -> (HG, C, HB*D)
        return w.reshape(C, HG, QW).transpose(1, 0, 2)

    # (HG, C, 3*HB*D): per head-block [Q slab | K slab | V slab]
    w_heads = jnp.concatenate([blockify(wq), blockify(wk), blockify(wv)],
                              axis=-1)
    wp_heads = params["w_proj"].reshape(HG, QW, C)    # proj rows by head-block
    bias = params["b_proj"]                           # (1, C), stays f32

    # bf16 matmul operands halve HBM/VMEM traffic; accumulation stays f32.
    x_in = x.astype(compute_dtype)
    w_heads = w_heads.astype(compute_dtype)
    wp_heads = wp_heads.astype(compute_dtype)

    kernel = _make_attention_kernel(N, C, D, HB, compute_dtype, approx_recip)

    grid_spec = pltpu.PrefetchScalarGridSpec(
        num_scalar_prefetch=0,
        grid=(B, HG),                                 # head-block axis = reduction
        in_specs=[
            # x block keyed on batch only -> fetched once per batch element.
            pl.BlockSpec((None, N, C), lambda b, hg: (b, 0, 0)),
            # Resident packed weights: full block, constant index -> one DMA.
            pl.BlockSpec((HG, C, 3 * QW), lambda b, hg: (0, 0, 0)),
            pl.BlockSpec((HG, QW, C), lambda b, hg: (0, 0, 0)),
            pl.BlockSpec((1, C), lambda b, hg: (0, 0)),               # proj bias
        ],
        out_specs=pl.BlockSpec((None, N, C), lambda b, hg: (b, 0, 0)),
    )

    # VMEM budget derived from the working set (clamped to 75% of physical).
    bpe = jnp.dtype(compute_dtype).itemsize
    x_block = N * C * bpe
    out_block = N * C * 4
    weight_bytes = 4 * C * C * bpe + C * 4            # Wqkv + Wproj + bias
    inter = (N * 3 * QW * (4 + bpe)   # fused qkv (f32 acc + cast)
             + N * N * 4              # per-head score/probability tile
             + N * QW * (4 + bpe)     # o block
             + N * C * 4)             # contrib
    needed = 2 * x_block + 2 * out_block + 2 * weight_bytes + inter + (1 << 20)
    try:
        vmem_cap = pltpu.get_tpu_info().vmem_capacity_bytes
    except Exception:
        vmem_cap = 64 * 1024 * 1024
    vmem_limit = int(min(max(needed, 32 * 1024 * 1024), vmem_cap * 3 // 4))

    cost = pl.CostEstimate(
        flops=int(2 * B * N * C * 3 * C          # QKV projection
                  + 4 * B * H * N * N * D        # scores + PV
                  + 2 * B * N * C * C),          # output projection
        transcendentals=int(B * H * N * (N + 1)),
        bytes_accessed=int(B * N * C * bpe + 4 * C * C * bpe + C * 4
                           + B * N * C * 4),
    )

    return pl.pallas_call(
        kernel,
        out_shape=jax.ShapeDtypeStruct((B, N, C), jnp.float32),
        grid_spec=grid_spec,
        compiler_params=pltpu.CompilerParams(
            dimension_semantics=("parallel", "arbitrary"),
            vmem_limit_bytes=vmem_limit,
        ),
        cost_estimate=cost,
    )(x_in, w_heads, wp_heads, bias)


def reference(x, params, num_heads):
    """Pure-JAX replica of the PyTorch forward (f32 everywhere)."""
    B, N, C = x.shape
    H, D = num_heads, C // num_heads
    qkv = x @ params["w_qkv"]                                 # (B, N, 3C)
    q, k, v = jnp.split(qkv, 3, axis=-1)

    def split_heads(t):
        return t.reshape(B, N, H, D).transpose(0, 2, 1, 3)    # (B, H, N, D)

    q, k, v = split_heads(q), split_heads(k), split_heads(v)
    s = jnp.einsum("bhqd,bhkd->bhqk", q, k) / jnp.sqrt(jnp.float32(D))
    a = jax.nn.softmax(s, axis=-1)
    o = jnp.einsum("bhqk,bhkd->bhqd", a, v)
    o = o.transpose(0, 2, 1, 3).reshape(B, N, C)
    return o @ params["w_proj"] + params["b_proj"]


def init_params(key, dim):
    ks = jax.random.split(key, 3)
    bound = 1.0 / np.sqrt(dim)
    return {
        # nn.Linear weights, pre-transposed to (in, out); qkv has no bias.
        "w_qkv": jax.random.uniform(ks[0], (dim, 3 * dim), jnp.float32,
                                    -bound, bound),
        "w_proj": jax.random.uniform(ks[1], (dim, dim), jnp.float32,
                                     -bound, bound),
        "b_proj": jax.random.uniform(ks[2], (1, dim), jnp.float32,
                                     -bound, bound),
    }


if __name__ == "__main__":
    B, N, C = 2, 8, 32          # batch, seq_len, dim
    num_heads = 4               # head_dim = 8

    key = jax.random.PRNGKey(0)
    kx, kp = jax.random.split(key)
    x = jax.random.normal(kx, (B, N, C), jnp.float32)
    params = init_params(kp, C)

    out_ref = reference(x, params, num_heads)

    # f32 matmul operands, default head blocking (HG == 1) — tight check.
    out_f32 = attention_forward(x, params, num_heads,
                                compute_dtype=jnp.float32)
    jax.block_until_ready(out_f32)
    np.testing.assert_allclose(np.asarray(out_f32), np.asarray(out_ref),
                               rtol=5e-3, atol=5e-3)

    # f32, head_block=2 -> two head-block grid steps; exercises the
    # resident-weight indexing and the out_ref accumulation path.
    out_hb2 = attention_forward(x, params, num_heads,
                                compute_dtype=jnp.float32, head_block=2)
    jax.block_until_ready(out_hb2)
    np.testing.assert_allclose(np.asarray(out_hb2), np.asarray(out_ref),
                               rtol=5e-3, atol=5e-3)

    # Default bf16 matmul operands, f32 accumulation — perf config.
    out_bf16 = attention_forward(x, params, num_heads)
    jax.block_until_ready(out_bf16)
    np.testing.assert_allclose(np.asarray(out_bf16), np.asarray(out_ref),
                               rtol=5e-2, atol=5e-2)

    print("KERNEL_OK")
</pallas_src>

<mosaic_0001>
module attributes {stable_mosaic.version = 11 : i64} {
  func.func @kernel(%arg0: i32, %arg1: i32, %arg2: memref<1x8x32xf32, #tpu.memory_space<vmem>>, %arg3: memref<1x32x96xf32, #tpu.memory_space<vmem>>, %arg4: memref<1x32x32xf32, #tpu.memory_space<vmem>>, %arg5: memref<1x32xf32, #tpu.memory_space<vmem>>, %arg6: memref<1x8x32xf32, #tpu.memory_space<vmem>>) attributes {dimension_semantics = [#tpu.dimension_semantics<parallel>, #tpu.dimension_semantics<arbitrary>], iteration_bounds = array<i64: 2, 1>, scalar_prefetch = 0 : i64, scratch_operands = 0 : i64, tpu.core_type = #tpu.core_type<tc>, window_params = [{transform_indices = @transform_0, window_bounds = array<i64: 1, 8, 32>}, {pipeline_mode = #tpu.pipeline_mode<synchronous>, transform_indices = @transform_1, window_bounds = array<i64: 1, 32, 96>}, {pipeline_mode = #tpu.pipeline_mode<synchronous>, transform_indices = @transform_2, window_bounds = array<i64: 1, 32, 32>}, {pipeline_mode = #tpu.pipeline_mode<synchronous>, transform_indices = @transform_3, window_bounds = array<i64: 1, 32>}, {transform_indices = @transform_4, window_bounds = array<i64: 1, 8, 32>}]} {
    %c0 = arith.constant 0 : index
    %c0_0 = arith.constant 0 : index
    %c0_1 = arith.constant 0 : index
    %0 = vector.load %arg2[%c0, %c0_0, %c0_1] : memref<1x8x32xf32, #tpu.memory_space<vmem>>, vector<1x8x32xf32>
    %1 = vector.shape_cast %0 : vector<1x8x32xf32> to vector<8x32xf32>
    %2 = arith.index_cast %arg1 : i32 to index
    %c0_2 = arith.constant 0 : index
    %c0_3 = arith.constant 0 : index
    %3 = vector.load %arg3[%2, %c0_2, %c0_3] : memref<1x32x96xf32, #tpu.memory_space<vmem>>, vector<1x32x96xf32>
    %4 = vector.shape_cast %3 : vector<1x32x96xf32> to vector<32x96xf32>
    %cst = arith.constant dense<0.000000e+00> : vector<8x96xf32>
    %5 = tpu.matmul %1, %4, %cst {dimension_numbers = #tpu.dot_dimension_numbers<[1], [0], [0], [1], [0, 0, 1, 1], [], []>} : vector<8x32xf32>, vector<32x96xf32>, vector<8x96xf32> -> vector<8x96xf32>
    %6 = vector.extract_strided_slice %5 {offsets = [0, 0], sizes = [8, 32], strides = [1, 1]} : vector<8x96xf32> to vector<8x32xf32>
    %7 = vector.extract_strided_slice %5 {offsets = [0, 32], sizes = [8, 32], strides = [1, 1]} : vector<8x96xf32> to vector<8x32xf32>
    %8 = vector.extract_strided_slice %5 {offsets = [0, 64], sizes = [8, 32], strides = [1, 1]} : vector<8x96xf32> to vector<8x32xf32>
    %9 = vector.extract_strided_slice %6 {offsets = [0, 0], sizes = [8, 8], strides = [1, 1]} : vector<8x32xf32> to vector<8x8xf32>
    %10 = vector.extract_strided_slice %7 {offsets = [0, 0], sizes = [8, 8], strides = [1, 1]} : vector<8x32xf32> to vector<8x8xf32>
    %11 = vector.extract_strided_slice %8 {offsets = [0, 0], sizes = [8, 8], strides = [1, 1]} : vector<8x32xf32> to vector<8x8xf32>
    %cst_4 = arith.constant dense<0.000000e+00> : vector<8x8xf32>
    %12 = tpu.matmul %9, %10, %cst_4 {dimension_numbers = #tpu.dot_dimension_numbers<[1], [1], [0], [0], [0, 0, 1, 0], [], []>} : vector<8x8xf32>, vector<8x8xf32>, vector<8x8xf32> -> vector<8x8xf32>
    %cst_5 = arith.constant dense<0xFF800000> : vector<8xf32>
    %13 = vector.multi_reduction <maximumf>, %12, %cst_5 [1] : vector<8x8xf32> to vector<8xf32>
    %14 = vector.shape_cast %13 : vector<8xf32> to vector<8x1xf32>
    %15 = vector.broadcast %14 : vector<8x1xf32> to vector<8x8xf32>
    %16 = arith.subf %12, %15 : vector<8x8xf32>
    %17 = math.exp %16 : vector<8x8xf32>
    %cst_6 = arith.constant dense<0.000000e+00> : vector<8xf32>
    %18 = vector.multi_reduction <add>, %17, %cst_6 [1] : vector<8x8xf32> to vector<8xf32>
    %19 = vector.shape_cast %18 : vector<8xf32> to vector<8x1xf32>
    %cst_7 = arith.constant dense<0.000000e+00> : vector<8x8xf32>
    %20 = tpu.matmul %17, %11, %cst_7 {dimension_numbers = #tpu.dot_dimension_numbers<[1], [0], [0], [1], [0, 0, 1, 1], [], []>} : vector<8x8xf32>, vector<8x8xf32>, vector<8x8xf32> -> vector<8x8xf32>
    %21 = tpu.reciprocal %19 {approx = true} : vector<8x1xf32> -> vector<8x1xf32>
    %22 = vector.broadcast %21 : vector<8x1xf32> to vector<8x8xf32>
    %23 = arith.mulf %20, %22 : vector<8x8xf32>
    %24 = vector.extract_strided_slice %6 {offsets = [0, 8], sizes = [8, 8], strides = [1, 1]} : vector<8x32xf32> to vector<8x8xf32>
    %25 = vector.extract_strided_slice %7 {offsets = [0, 8], sizes = [8, 8], strides = [1, 1]} : vector<8x32xf32> to vector<8x8xf32>
    %26 = vector.extract_strided_slice %8 {offsets = [0, 8], sizes = [8, 8], strides = [1, 1]} : vector<8x32xf32> to vector<8x8xf32>
    %cst_8 = arith.constant dense<0.000000e+00> : vector<8x8xf32>
    %27 = tpu.matmul %24, %25, %cst_8 {dimension_numbers = #tpu.dot_dimension_numbers<[1], [1], [0], [0], [0, 0, 1, 0], [], []>} : vector<8x8xf32>, vector<8x8xf32>, vector<8x8xf32> -> vector<8x8xf32>
    %cst_9 = arith.constant dense<0xFF800000> : vector<8xf32>
    %28 = vector.multi_reduction <maximumf>, %27, %cst_9 [1] : vector<8x8xf32> to vector<8xf32>
    %29 = vector.shape_cast %28 : vector<8xf32> to vector<8x1xf32>
    %30 = vector.broadcast %29 : vector<8x1xf32> to vector<8x8xf32>
    %31 = arith.subf %27, %30 : vector<8x8xf32>
    %32 = math.exp %31 : vector<8x8xf32>
    %cst_10 = arith.constant dense<0.000000e+00> : vector<8xf32>
    %33 = vector.multi_reduction <add>, %32, %cst_10 [1] : vector<8x8xf32> to vector<8xf32>
    %34 = vector.shape_cast %33 : vector<8xf32> to vector<8x1xf32>
    %cst_11 = arith.constant dense<0.000000e+00> : vector<8x8xf32>
    %35 = tpu.matmul %32, %26, %cst_11 {dimension_numbers = #tpu.dot_dimension_numbers<[1], [0], [0], [1], [0, 0, 1, 1], [], []>} : vector<8x8xf32>, vector<8x8xf32>, vector<8x8xf32> -> vector<8x8xf32>
    %36 = tpu.reciprocal %34 {approx = true} : vector<8x1xf32> -> vector<8x1xf32>
    %37 = vector.broadcast %36 : vector<8x1xf32> to vector<8x8xf32>
    %38 = arith.mulf %35, %37 : vector<8x8xf32>
    %39 = vector.extract_strided_slice %6 {offsets = [0, 16], sizes = [8, 8], strides = [1, 1]} : vector<8x32xf32> to vector<8x8xf32>
    %40 = vector.extract_strided_slice %7 {offsets = [0, 16], sizes = [8, 8], strides = [1, 1]} : vector<8x32xf32> to vector<8x8xf32>
    %41 = vector.extract_strided_slice %8 {offsets = [0, 16], sizes = [8, 8], strides = [1, 1]} : vector<8x32xf32> to vector<8x8xf32>
    %cst_12 = arith.constant dense<0.000000e+00> : vector<8x8xf32>
    %42 = tpu.matmul %39, %40, %cst_12 {dimension_numbers = #tpu.dot_dimension_numbers<[1], [1], [0], [0], [0, 0, 1, 0], [], []>} : vector<8x8xf32>, vector<8x8xf32>, vector<8x8xf32> -> vector<8x8xf32>
    %cst_13 = arith.constant dense<0xFF800000> : vector<8xf32>
    %43 = vector.multi_reduction <maximumf>, %42, %cst_13 [1] : vector<8x8xf32> to vector<8xf32>
    %44 = vector.shape_cast %43 : vector<8xf32> to vector<8x1xf32>
    %45 = vector.broadcast %44 : vector<8x1xf32> to vector<8x8xf32>
    %46 = arith.subf %42, %45 : vector<8x8xf32>
    %47 = math.exp %46 : vector<8x8xf32>
    %cst_14 = arith.constant dense<0.000000e+00> : vector<8xf32>
    %48 = vector.multi_reduction <add>, %47, %cst_14 [1] : vector<8x8xf32> to vector<8xf32>
    %49 = vector.shape_cast %48 : vector<8xf32> to vector<8x1xf32>
    %cst_15 = arith.constant dense<0.000000e+00> : vector<8x8xf32>
    %50 = tpu.matmul %47, %41, %cst_15 {dimension_numbers = #tpu.dot_dimension_numbers<[1], [0], [0], [1], [0, 0, 1, 1], [], []>} : vector<8x8xf32>, vector<8x8xf32>, vector<8x8xf32> -> vector<8x8xf32>
    %51 = tpu.reciprocal %49 {approx = true} : vector<8x1xf32> -> vector<8x1xf32>
    %52 = vector.broadcast %51 : vector<8x1xf32> to vector<8x8xf32>
    %53 = arith.mulf %50, %52 : vector<8x8xf32>
    %54 = vector.extract_strided_slice %6 {offsets = [0, 24], sizes = [8, 8], strides = [1, 1]} : vector<8x32xf32> to vector<8x8xf32>
    %55 = vector.extract_strided_slice %7 {offsets = [0, 24], sizes = [8, 8], strides = [1, 1]} : vector<8x32xf32> to vector<8x8xf32>
    %56 = vector.extract_strided_slice %8 {offsets = [0, 24], sizes = [8, 8], strides = [1, 1]} : vector<8x32xf32> to vector<8x8xf32>
    %cst_16 = arith.constant dense<0.000000e+00> : vector<8x8xf32>
    %57 = tpu.matmul %54, %55, %cst_16 {dimension_numbers = #tpu.dot_dimension_numbers<[1], [1], [0], [0], [0, 0, 1, 0], [], []>} : vector<8x8xf32>, vector<8x8xf32>, vector<8x8xf32> -> vector<8x8xf32>
    %cst_17 = arith.constant dense<0xFF800000> : vector<8xf32>
    %58 = vector.multi_reduction <maximumf>, %57, %cst_17 [1] : vector<8x8xf32> to vector<8xf32>
    %59 = vector.shape_cast %58 : vector<8xf32> to vector<8x1xf32>
    %60 = vector.broadcast %59 : vector<8x1xf32> to vector<8x8xf32>
    %61 = arith.subf %57, %60 : vector<8x8xf32>
    %62 = math.exp %61 : vector<8x8xf32>
    %cst_18 = arith.constant dense<0.000000e+00> : vector<8xf32>
    %63 = vector.multi_reduction <add>, %62, %cst_18 [1] : vector<8x8xf32> to vector<8xf32>
    %64 = vector.shape_cast %63 : vector<8xf32> to vector<8x1xf32>
    %cst_19 = arith.constant dense<0.000000e+00> : vector<8x8xf32>
    %65 = tpu.matmul %62, %56, %cst_19 {dimension_numbers = #tpu.dot_dimension_numbers<[1], [0], [0], [1], [0, 0, 1, 1], [], []>} : vector<8x8xf32>, vector<8x8xf32>, vector<8x8xf32> -> vector<8x8xf32>
    %66 = tpu.reciprocal %64 {approx = true} : vector<8x1xf32> -> vector<8x1xf32>
    %67 = vector.broadcast %66 : vector<8x1xf32> to vector<8x8xf32>
    %68 = arith.mulf %65, %67 : vector<8x8xf32>
    %69 = tpu.concatenate %23, %38, %53, %68 in 1 : vector<8x8xf32>, vector<8x8xf32>, vector<8x8xf32>, vector<8x8xf32> -> vector<8x32xf32>
    %70 = arith.index_cast %arg1 : i32 to index
    %c0_20 = arith.constant 0 : index
    %c0_21 = arith.constant 0 : index
    %71 = vector.load %arg4[%70, %c0_20, %c0_21] : memref<1x32x32xf32, #tpu.memory_space<vmem>>, vector<1x32x32xf32>
    %72 = vector.shape_cast %71 : vector<1x32x32xf32> to vector<32x32xf32>
    %cst_22 = arith.constant dense<0.000000e+00> : vector<8x32xf32>
    %73 = tpu.matmul %69, %72, %cst_22 {dimension_numbers = #tpu.dot_dimension_numbers<[1], [0], [0], [1], [0, 0, 1, 1], [], []>} : vector<8x32xf32>, vector<32x32xf32>, vector<8x32xf32> -> vector<8x32xf32>
    %c0_i32 = arith.constant 0 : i32
    %74 = arith.cmpi eq, %arg1, %c0_i32 : i32
    %75 = arith.extui %74 : i1 to i32
    %c0_i32_23 = arith.constant 0 : i32
    %76 = arith.cmpi ne, %75, %c0_i32_23 : i32
    scf.if %76 {
      %c0_26 = arith.constant 0 : index
      %c0_27 = arith.constant 0 : index
      %80 = vector.load %arg5[%c0_26, %c0_27] : memref<1x32xf32, #tpu.memory_space<vmem>>, vector<1x32xf32>
      %81 = vector.broadcast %80 : vector<1x32xf32> to vector<8x32xf32>
      %82 = arith.addf %73, %81 : vector<8x32xf32>
      %c0_28 = arith.constant 0 : index
      %c0_29 = arith.constant 0 : index
      %c0_30 = arith.constant 0 : index
      %83 = vector.load %arg6[%c0_28, %c0_29, %c0_30] : memref<1x8x32xf32, #tpu.memory_space<vmem>>, vector<1x8x32xf32>
      %84 = vector.shape_cast %83 : vector<1x8x32xf32> to vector<8x32xf32>
      %85 = vector.shape_cast %82 : vector<8x32xf32> to vector<1x8x32xf32>
      tpu.vector_store %arg6[%c0_28, %c0_29, %c0_30], %85 {strides = array<i32>} : memref<1x8x32xf32, #tpu.memory_space<vmem>>, vector<1x8x32xf32>,
    } else {
    }
    %c0_i32_24 = arith.constant 0 : i32
    %77 = arith.cmpi sgt, %arg1, %c0_i32_24 : i32
    %78 = arith.extui %77 : i1 to i32
    %c0_i32_25 = arith.constant 0 : i32
    %79 = arith.cmpi ne, %78, %c0_i32_25 : i32
    scf.if %79 {
      %c0_26 = arith.constant 0 : index
      %c0_27 = arith.constant 0 : index
      %c0_28 = arith.constant 0 : index
      %80 = vector.load %arg6[%c0_26, %c0_27, %c0_28] : memref<1x8x32xf32, #tpu.memory_space<vmem>>, vector<1x8x32xf32>
      %81 = vector.shape_cast %80 : vector<1x8x32xf32> to vector<8x32xf32>
      %82 = arith.addf %81, %73 : vector<8x32xf32>
      %c0_29 = arith.constant 0 : index
      %c0_30 = arith.constant 0 : index
      %c0_31 = arith.constant 0 : index
      %83 = vector.load %arg6[%c0_29, %c0_30, %c0_31] : memref<1x8x32xf32, #tpu.memory_space<vmem>>, vector<1x8x32xf32>
      %84 = vector.shape_cast %83 : vector<1x8x32xf32> to vector<8x32xf32>
      %85 = vector.shape_cast %82 : vector<8x32xf32> to vector<1x8x32xf32>
      tpu.vector_store %arg6[%c0_29, %c0_30, %c0_31], %85 {strides = array<i32>} : memref<1x8x32xf32, #tpu.memory_space<vmem>>, vector<1x8x32xf32>,
    } else {
    }
    return
  }
  func.func @transform_0(%arg0: i32, %arg1: i32) -> (i32, i32, i32) {
    %c0_i32 = arith.constant 0 : i32
    %c0_i32_0 = arith.constant 0 : i32
    %c0_i32_1 = arith.constant 0 : i32
    return %arg0, %c0_i32, %c0_i32_0 : i32, i32, i32
  }
  func.func @transform_1(%arg0: i32, %arg1: i32) -> (i32, i32, i32) {
    %c0_i32 = arith.constant 0 : i32
    %c0_i32_0 = arith.constant 0 : i32
    %c0_i32_1 = arith.constant 0 : i32
    %c0_i32_2 = arith.constant 0 : i32
    return %c0_i32, %c0_i32_0, %c0_i32_1 : i32, i32, i32
  }
  func.func @transform_2(%arg0: i32, %arg1: i32) -> (i32, i32, i32) {
    %c0_i32 = arith.constant 0 : i32
    %c0_i32_0 = arith.constant 0 : i32
    %c0_i32_1 = arith.constant 0 : i32
    %c0_i32_2 = arith.constant 0 : i32
    return %c0_i32, %c0_i32_0, %c0_i32_1 : i32, i32, i32
  }
  func.func @transform_3(%arg0: i32, %arg1: i32) -> (i32, i32) {
    %c0_i32 = arith.constant 0 : i32
    %c0_i32_0 = arith.constant 0 : i32
    %c0_i32_1 = arith.constant 0 : i32
    return %c0_i32, %c0_i32_0 : i32, i32
  }
  func.func @transform_4(%arg0: i32, %arg1: i32) -> (i32, i32, i32) {
    %c0_i32 = arith.constant 0 : i32
    %c0_i32_0 = arith.constant 0 : i32
    %c0_i32_1 = arith.constant 0 : i32
    return %arg0, %c0_i32, %c0_i32_0 : i32, i32, i32
  }
}

</mosaic_0001>

<llo_original>
// kernel: tpu_custom_call.1
$region0: #{tpu_custom_call.1}
  #allocation0 [shape = 'u32[]', space=smem, size = 0x4, offset = 0x4, fixed_abs, tag = 'smem constant byte address 0x4 - core index']
  #allocation1 [shape = 'u32[144,128]{1,0:T(1,128)}', space=vmem, size = 0x12000, scoped, tag = 'internal scratch']
  %s0 = inlined_call_operand.hbm [shape: f32[2,8,32], index: 0, kind: input, shape index: {}]
  %s1 = inlined_call_operand.hbm [shape: f32[1,32,96], index: 1, kind: input, shape index: {}]
  %s2 = inlined_call_operand.hbm [shape: f32[1,32,32], index: 2, kind: input, shape index: {}]
  %s3 = inlined_call_operand.vmem [shape: f32[1,32], index: 3, kind: input, shape index: {}]
  %s4 = inlined_call_operand.hbm [shape: f32[2,8,32], index: 4, kind: output, shape index: {}]
  %s5 = sld [smem:[#allocation0]]
  $region69: #{tpu_custom_call.1} parent=0
    _
  %s7 = ssub.s32 1, %s5
  %s8 = scalar_select 0, %s7, %s5
  $region1: #{tpu_custom_call.1} parent=0
    #allocation2 [shape = 'u8[8192]{0}', space=vmem, size = 0x2000, scoped, tag = 'input window, operand 0']
    #allocation3 [shape = 's32[2]{0}', space=sflag, size = 0x8, scoped, tag = 'scoped memory for tpu_custom_call.1']
    #allocation4 [shape = 's32[2]{0}', space=sflag, size = 0x8, scoped, tag = 'scoped memory for tpu_custom_call.1']
    #allocation5 [shape = 'u8[16384]{0}', space=vmem, size = 0x4000, scoped, tag = 'input window, operand 1, single buffered']
    #allocation6 [shape = 's32[1]{0}', space=sflag, size = 0x4, scoped, tag = 'scoped memory for tpu_custom_call.1']
    #allocation7 [shape = 'u8[16384]{0}', space=vmem, size = 0x4000, scoped, tag = 'input window, operand 2, single buffered']
    #allocation8 [shape = 'u8[8192]{0}', space=vmem, size = 0x2000, scoped, tag = 'output window, operand 0']
    %9 = vsyncpa [#allocation3], 0
    %s10 = scalar_lea.sflag [#allocation3], 1
    %11 = vsyncpa %s10, 0
    %12 = vsyncpa [#allocation6], 0
    %13 = vsyncpa [#allocation4], 0
    %s14 = scalar_lea.sflag [#allocation4], 1
    %15 = vsyncpa %s14, 0
    loop: start=0, step=1, limit=4
    $region2: #{tpu_custom_call.1} parent=1 // loop_pre_header
      _
    $region3: #{tpu_custom_call.1} parent=1 // loop_header
      %s17 = sphi 0, %s21
      %p18 = scmp.ge.s32.totalorder %s17, 4
      %s24 = sphi 0, %s36
      %s25 = sphi 0, %s32
      %s26 = sphi 0, %s24
      %s27 = sphi 0, %s25
      %s28 = sphi 0, %s26
      %s29 = sphi 0, %s27
      %s39 = sphi 0, %s41
      %s42 = sphi 0, %s39
      %s43 = sphi 0, %s42
      %s59 = sphi 0, %s43
      %s63 = sphi 0, %s63
      %s65 = sphi 0, %s63
      %s66 = sphi 0, %s65
      %s80 = sphi 0, %s66
      %s84 = sphi 0, %s84
      %s86 = sphi 0, %s84
      %s87 = sphi 0, %s86
      %s101 = sphi 0, %s87
      %s105 = sphi 0, %s105
      %s107 = sphi 0, %s105
      %s108 = sphi 0, %s107
      %s122 = sphi 0, %s108
      %s128 = sphi 0, %s130
      %s131 = sphi 0, %s128
      %s132 = sphi 0, %s131
      %s148 = sphi 0, %s132
    $region4: #{tpu_custom_call.1} parent=1 // loop_header_branch
      %20 = sbr.rel (%p18) target = $region8
    $region5: #{tpu_custom_call.1} parent=1 // loop_body
      %s22 = ssub.s32 %s17, 1
      %s23 = ssub.s32 %s17, 2
      %s30 = sadd.s32 1, %s25
      %p31 = scmp.ge.s32.totalorder %s30, 1
      %s32 = scalar_select %p31, 0, %s30
      %s33 = sadd.s32 1, %s24
      %s34 = scalar_select %p31, %s33, %s24
      %p35 = scmp.ge.s32.totalorder %s34, 2
      %s36 = scalar_select %p35, 0, %s34
      %s37 = ssub.s32 %s24, %s36
      %p38 = scmp.eq.s32.totalorder %s37, 0
      %s40 = sadd.s32 %s39, 1
      %s41 = scalar_select %p38, %s39, %s40
      %p44 = pneg %p38
      %p45 = scmp.eq.s32.totalorder %s17, 1
      %p46 = por %p44, %p45
      %p47 = scmp.ne.s32.totalorder %s39, %s42
      %p48 = scmp.eq.s32.totalorder %s17, 0
      %p49 = por %p47, %p48
      %p50 = scmp.ne.s32.totalorder %s39, %s42
      %p51 = scmp.eq.s32.totalorder %s22, 1
      %p52 = por %p50, %p51
      %p53 = scmp.ne.s32.totalorder %s42, %s43
      %p54 = scmp.eq.s32.totalorder %s22, 0
      %p55 = por %p53, %p54
      %p56 = scmp.ne.s32.totalorder %s42, %s43
      %p57 = scmp.eq.s32.totalorder %s23, 1
      %p58 = por %p56, %p57
      %p60 = scmp.ne.s32.totalorder %s43, %s59
      %p61 = scmp.eq.s32.totalorder %s23, 0
      %p62 = por %p60, %p61
      %s64 = sadd.s32 %s63, 1
      %p67 = scmp.eq.s32.totalorder %s17, 1
      %p68 = scmp.ne.s32.totalorder %s63, %s65
      %p69 = scmp.eq.s32.totalorder %s17, 0
      %p70 = por %p68, %p69
      %p71 = scmp.ne.s32.totalorder %s63, %s65
      %p72 = scmp.eq.s32.totalorder %s22, 1
      %p73 = por %p71, %p72
      %p74 = scmp.ne.s32.totalorder %s65, %s66
      %p75 = scmp.eq.s32.totalorder %s22, 0
      %p76 = por %p74, %p75
      %p77 = scmp.ne.s32.totalorder %s65, %s66
      %p78 = scmp.eq.s32.totalorder %s23, 1
      %p79 = por %p77, %p78
      %p81 = scmp.ne.s32.totalorder %s66, %s80
      %p82 = scmp.eq.s32.totalorder %s23, 0
      %p83 = por %p81, %p82
      %s85 = sadd.s32 %s84, 1
      %p88 = scmp.eq.s32.totalorder %s17, 1
      %p89 = scmp.ne.s32.totalorder %s84, %s86
      %p90 = scmp.eq.s32.totalorder %s17, 0
      %p91 = por %p89, %p90
      %p92 = scmp.ne.s32.totalorder %s84, %s86
      %p93 = scmp.eq.s32.totalorder %s22, 1
      %p94 = por %p92, %p93
      %p95 = scmp.ne.s32.totalorder %s86, %s87
      %p96 = scmp.eq.s32.totalorder %s22, 0
      %p97 = por %p95, %p96
      %p98 = scmp.ne.s32.totalorder %s86, %s87
      %p99 = scmp.eq.s32.totalorder %s23, 1
      %p100 = por %p98, %p99
      %p102 = scmp.ne.s32.totalorder %s87, %s101
      %p103 = scmp.eq.s32.totalorder %s23, 0
      %p104 = por %p102, %p103
      %s106 = sadd.s32 %s105, 1
      %p109 = scmp.eq.s32.totalorder %s17, 1
      %p110 = scmp.ne.s32.totalorder %s105, %s107
      %p111 = scmp.eq.s32.totalorder %s17, 0
      %p112 = por %p110, %p111
      %p113 = scmp.ne.s32.totalorder %s105, %s107
      %p114 = scmp.eq.s32.totalorder %s22, 1
      %p115 = por %p113, %p114
      %p116 = scmp.ne.s32.totalorder %s107, %s108
      %p117 = scmp.eq.s32.totalorder %s22, 0
      %p118 = por %p116, %p117
      %p119 = scmp.ne.s32.totalorder %s107, %s108
      %p120 = scmp.eq.s32.totalorder %s23, 1
      %p121 = por %p119, %p120
      %p123 = scmp.ne.s32.totalorder %s108, %s122
      %p124 = scmp.eq.s32.totalorder %s23, 0
      %p125 = por %p123, %p124
      %s126 = ssub.s32 %s24, %s36
      %p127 = scmp.eq.s32.totalorder %s126, 0
      %s129 = sadd.s32 %s128, 1
      %s130 = scalar_select %p127, %s128, %s129
      %p133 = pneg %p127
      %p134 = scmp.eq.s32.totalorder %s17, 1
      %p135 = por %p133, %p134
      %p136 = scmp.ne.s32.totalorder %s128, %s131
      %p137 = scmp.eq.s32.totalorder %s17, 0
      %p138 = por %p136, %p137
      %p139 = scmp.ne.s32.totalorder %s128, %s131
      %p140 = scmp.eq.s32.totalorder %s22, 1
      %p141 = por %p139, %p140
      %p142 = scmp.ne.s32.totalorder %s131, %s132
      %p143 = scmp.eq.s32.totalorder %s22, 0
      %p144 = por %p142, %p143
      %p145 = scmp.ne.s32.totalorder %s131, %s132
      %p146 = scmp.eq.s32.totalorder %s23, 1
      %p147 = por %p145, %p146
      %p149 = scmp.ne.s32.totalorder %s132, %s148
      %p150 = scmp.eq.s32.totalorder %s23, 0
      %p151 = por %p149, %p150
      %p152 = scmp.le.s32.totalorder 1, %s17
      %p153 = scmp.lt.s32.totalorder %s17, 3
      %p154 = pnand %p152, %p153
      %p155 = pneg %p154
      // Predicated region
      $region9: #{tpu_custom_call.1} parent=5 // pred_check
        _
      $region10: #{tpu_custom_call.1} parent=5 // pred_check_branch
        %157 = sbr.rel (%p154) target = $region12
      $region11: #{tpu_custom_call.1} parent=5 // pred_region
        %s158 = ssub.s32 %s17, 1
        // Predicated region
        $region13: #{tpu_custom_call.1} parent=11 // pred_check
          %p159 = pneg %p76
        $region14: #{tpu_custom_call.1} parent=11 // pred_check_branch
          %161 = sbr.rel (%p159) target = $region16
        $region15: #{tpu_custom_call.1} parent=11 // pred_region
          %s163 = ssub.s32 512, 512
          %164 = vsyncadd [#allocation6], %s163
          %s165 = sshll.u32 [#allocation5], 4
          %s166 = int_to_ptr.vmem [resolvable:$true] %s165
          %171 = dma.hbm_to_vmem [thread:$0]  %s1, 512, %s166, [#allocation6], 128, 128, 8
        $region16: #{tpu_custom_call.1} parent=11 // pred_fallthru
          _
        // Predicated region
        $region17: #{tpu_custom_call.1} parent=11 // pred_check
          %p172 = pneg %p97
        $region18: #{tpu_custom_call.1} parent=11 // pred_check_branch
          %174 = sbr.rel (%p172) target = $region20
        $region19: #{tpu_custom_call.1} parent=11 // pred_region
          %s176 = ssub.s32 512, 512
          %177 = vsyncadd [#allocation6], %s176
          %s178 = sshll.u32 [#allocation7], 4
          %s179 = int_to_ptr.vmem [resolvable:$true] %s178
          %184 = dma.hbm_to_vmem [thread:$0]  %s2, 512, %s179, [#allocation6], 128, 128, 8
        $region20: #{tpu_custom_call.1} parent=11 // pred_fallthru
          _
        // Predicated region
        $region21: #{tpu_custom_call.1} parent=11 // pred_check
          %p185 = pneg %p118
        $region22: #{tpu_custom_call.1} parent=11 // pred_check_branch
          %187 = sbr.rel (%p185) target = $region24
        $region23: #{tpu_custom_call.1} parent=11 // pred_region
          _
        $region24: #{tpu_custom_call.1} parent=11 // pred_fallthru
          _
      $region12: #{tpu_custom_call.1} parent=5 // pred_fallthru
        _
      %p188 = scmp.lt.s32.totalorder %s17, 2
      // Predicated region
      $region25: #{tpu_custom_call.1} parent=5 // pred_check
        %p189 = pneg %p188
      $region26: #{tpu_custom_call.1} parent=5 // pred_check_branch
        %191 = sbr.rel (%p189) target = $region28
      $region27: #{tpu_custom_call.1} parent=5 // pred_region
        // Predicated region
        $region29: #{tpu_custom_call.1} parent=27 // pred_check
          %p192 = pneg %p49
        $region30: #{tpu_custom_call.1} parent=27 // pred_check_branch
          %194 = sbr.rel (%p192) target = $region32
        $region31: #{tpu_custom_call.1} parent=27 // pred_region
          %s195 = sand.u32 %s39, 1
          %s196 = scalar_lea.sflag [#allocation3], %s195
          %s197 = sand.u32 %s39, 1
          %s198 = smul.addr %s197, 8
          %s199 = scalar_lea.vmem [#allocation2], %s198
          %s201 = ssub.s32 128, 128
          %202 = vsyncadd %s196, %s201
          %s203 = smul.addr %s24, 128
          %s204 = scalar_lea.hbm %s0, %s203
          %s206 = sshll.u32 %s199, 4
          %s207 = int_to_ptr.vmem [resolvable:$true] %s206
          %209 = dma.hbm_to_vmem [thread:$0]  %s204, 128, %s207, %s196
        $region32: #{tpu_custom_call.1} parent=27 // pred_fallthru
          _
      $region28: #{tpu_custom_call.1} parent=5 // pred_fallthru
        _
      %p210 = scmp.le.s32.totalorder 1, %s17
      %p211 = scmp.lt.s32.totalorder %s17, 3
      %p212 = pnand %p210, %p211
      %p213 = pneg %p212
      // Predicated region
      $region33: #{tpu_custom_call.1} parent=5 // pred_check
        _
      $region34: #{tpu_custom_call.1} parent=5 // pred_check_branch
        %215 = sbr.rel (%p212) target = $region36
      $region35: #{tpu_custom_call.1} parent=5 // pred_region
        %s216 = ssub.s32 %s17, 1
        %s217 = sand.u32 %s42, 1
        %s218 = scalar_lea.sflag [#allocation3], %s217
        %s219 = sand.u32 %s42, 1
        %s220 = smul.addr %s219, 8
        %s221 = scalar_lea.vmem [#allocation2], %s220
        // Predicated region
        $region37: #{tpu_custom_call.1} parent=35 // pred_check
          %p222 = pneg %p55
        $region38: #{tpu_custom_call.1} parent=35 // pred_check_branch
          %224 = sbr.rel (%p222) target = $region40
        $region39: #{tpu_custom_call.1} parent=35 // pred_region
          %225 = dma.done %s218, 128
        $region40: #{tpu_custom_call.1} parent=35 // pred_fallthru
          _
        // Predicated region
        $region41: #{tpu_custom_call.1} parent=35 // pred_check
          %p226 = pneg %p76
        $region42: #{tpu_custom_call.1} parent=35 // pred_check_branch
          %228 = sbr.rel (%p226) target = $region44
        $region43: #{tpu_custom_call.1} parent=35 // pred_region
          %229 = dma.done [#allocation6], 512
        $region44: #{tpu_custom_call.1} parent=35 // pred_fallthru
          _
        // Predicated region
        $region45: #{tpu_custom_call.1} parent=35 // pred_check
          %p230 = pneg %p97
        $region46: #{tpu_custom_call.1} parent=35 // pred_check_branch
          %232 = sbr.rel (%p230) target = $region48
        $region47: #{tpu_custom_call.1} parent=35 // pred_region
          %233 = dma.done [#allocation6], 512
        $region48: #{tpu_custom_call.1} parent=35 // pred_fallthru
          _
        %s234 = sand.u32 %s42, 1
        %s235 = scalar_lea.sflag [#allocation3], %s234
        %s236 = sand.u32 %s42, 1
        %s237 = smul.addr %s236, 8
        %s238 = scalar_lea.vmem [#allocation2], %s237
        %p239 = pneg %p55
        %p240 = pneg %p52
        %p241 = pneg %p76
        %p242 = pneg %p73
        %p243 = pneg %p97
        %p244 = pneg %p94
        %p245 = pneg %p118
        %p246 = pneg %p115
        %p247 = pneg %p144
        %p248 = pneg %p141
        %s249 = sand.u32 %s131, 1
        %s250 = scalar_lea.sflag [#allocation4], %s249
        %s251 = sand.u32 %s131, 1
        %s252 = smul.addr %s251, 8
        %s253 = scalar_lea.vmem [#allocation8], %s252
        %v254 = vld [vmem:[%s221] sm:$0xff]
        %s255 = smul.u32 %s27, 32
        %s256 = scalar_lea.vmem [#allocation5], %s255
        %v257 = vld [vmem:[%s256] sm:$0xff]
        %v258 = vld [vmem:[%s256 + $0x8] sm:$0xff]
        %v259 = vld [vmem:[%s256 + $0x10] sm:$0xff]
        %v260 = vld [vmem:[%s256 + $0x18] sm:$0xff]
        %vm261 = vcmask 261120
        %v263 = vsel %vm261, %v254, 0
        %265 = vmatprep.subr.mxu0 0.0
        %266 = vmatpush1.msra.mxu0 %v257
        %267 = vmatprep.subr.mxu0 0.0
        %268 = vmatpush1.msra.mxu0 %v258
        %269 = vmatprep.subr.mxu0 0.0
        %270 = vmatpush1.msra.mxu0 %v259
        %271 = vmatprep.subr.mxu0 0.0
        %272 = vmatpush1.msra.mxu0 %v260
        %273 = vmatprep.subr.mxu0 0.0
        %274 = vmatpush1.msra.mxu0 0.0
        %275 = vmatprep.subr.mxu0 0.0
        %276 = vmatpush1.msra.mxu0 0.0
        %277 = vmatprep.subr.mxu0 0.0
        %278 = vmatpush1.msra.mxu0 0.0
        %279 = vmatprep.subr.mxu0 0.0
        %280 = vmatpush1.msra.mxu0 0.0
        %281 = vmatprep.subr.mxu0 0.0
        %282 = vmatpush1.msra.mxu0 0.0
        %283 = vmatprep.subr.mxu0 0.0
        %284 = vmatpush1.msra.mxu0 0.0
        %285 = vmatprep.subr.mxu0 0.0
        %286 = vmatpush1.msra.mxu0 0.0
        %287 = vmatprep.subr.mxu0 0.0
        %288 = vmatpush1.msra.mxu0 0.0
        %289 = vmatprep.subr.mxu0 0.0
        %290 = vmatpush1.msra.mxu0 0.0
        %291 = vmatprep.subr.mxu0 0.0
        %292 = vmatpush1.msra.mxu0 0.0
        %293 = vmatprep.subr.mxu0 0.0
        %294 = vmatpush1.msra.mxu0 0.0
        %295 = vmatprep.subr.mxu0 0.0
        %296 = vmatpush1.msra.mxu0 0.0
        %297 = vmatprep.subr.mxu0 0.0
        %298 = vmatpush1.msra.mxu0 0.0
        %299 = vmatprep.subr.mxu0 0.0
        %300 = vmatpush1.msra.mxu0 0.0
        %301 = vmatprep.subr.mxu0 0.0
        %302 = vmatpush1.msra.mxu0 0.0
        %303 = vmatprep.subr.mxu0 0.0
        %304 = vmatpush1.msra.mxu0 0.0
        %305 = vmatprep.subr.mxu0 0.0
        %306 = vmatpush1.msra.mxu0 0.0
        %307 = vmatprep.subr.mxu0 0.0
        %308 = vmatpush1.msra.mxu0 0.0
        %309 = vmatprep.subr.mxu0 0.0
        %310 = vmatpush1.msra.mxu0 0.0
        %311 = vmatprep.subr.mxu0 0.0
        %312 = vmatpush1.msra.mxu0 0.0
        %313 = vmatprep.subr.mxu0 0.0
        %314 = vmatpush1.msra.mxu0 0.0
        %315 = vmatprep.subr.mxu0 0.0
        %316 = vmatpush1.msra.mxu0 0.0
        %317 = vmatprep.subr.mxu0 0.0
        %318 = vmatpush1.msra.mxu0 0.0
        %319 = vmatprep.subr.mxu0 0.0
        %320 = vmatpush1.msra.mxu0 0.0
        %321 = vmatprep.subr.mxu0 0.0
        %322 = vmatpush1.msra.mxu0 0.0
        %323 = vmatprep.subr.mxu0 0.0
        %324 = vmatpush1.msra.mxu0 0.0
        %325 = vmatprep.subr.mxu0 0.0
        %326 = vmatpush1.msra.mxu0 0.0
        %327 = vmatprep.subr.mxu0 0.0
        %328 = vmatpush1.msra.mxu0 0.0
        %329 = vmatprep.mubr.f32.mxu0 0.0
        %330 = vmatmul.mubr.f32.gmra.mrb[0].mxu0 %v263
        %v331 = vpop.f32.mrb[0].mxu0
        %v332 = vadd.f32 0.0, %v331
        %v333 = vpop.f32.mrb[0].mxu0
        %334 = vdwg.mxu0
        %336 = vrot.lane.b32.xlu0 %v332, 96
        %v337 = vpop.permute.xlu0 %336
        %vm338 = vcmask 64512
        %v339 = vsel %vm338, %v332, 0
        %v341 = vsel %vm338, %v337, 0
        %343 = vmatprep.subr.mxu0 0.0
        %344 = vmatpush1.xpose.msra.mxu0 %v341
        %345 = vmatprep.subr.mxu0 0.0
        %346 = vmatpush1.xpose.msra.mxu0 0.0
        %347 = vmatprep.subr.mxu0 0.0
        %348 = vmatpush1.xpose.msra.mxu0 0.0
        %349 = vmatprep.subr.mxu0 0.0
        %350 = vmatpush1.xpose.msra.mxu0 0.0
        %351 = vmatprep.subr.mxu0 0.0
        %352 = vmatpush1.xpose.msra.mxu0 0.0
        %353 = vmatprep.subr.mxu0 0.0
        %354 = vmatpush1.xpose.msra.mxu0 0.0
        %355 = vmatprep.subr.mxu0 0.0
        %356 = vmatpush1.xpose.msra.mxu0 0.0
        %357 = vmatprep.subr.mxu0 0.0
        %358 = vmatpush1.xpose.msra.mxu0 0.0
        %359 = vmatprep.subr.mxu0 0.0
        %360 = vmatpush1.xpose.msra.mxu0 0.0
        %361 = vmatprep.subr.mxu0 0.0
        %362 = vmatpush1.xpose.msra.mxu0 0.0
        %363 = vmatprep.subr.mxu0 0.0
        %364 = vmatpush1.xpose.msra.mxu0 0.0
        %365 = vmatprep.subr.mxu0 0.0
        %366 = vmatpush1.xpose.msra.mxu0 0.0
        %367 = vmatprep.subr.mxu0 0.0
        %368 = vmatpush1.xpose.msra.mxu0 0.0
        %369 = vmatprep.subr.mxu0 0.0
        %370 = vmatpush1.xpose.msra.mxu0 0.0
        %371 = vmatprep.subr.mxu0 0.0
        %372 = vmatpush1.xpose.msra.mxu0 0.0
        %373 = vmatprep.subr.mxu0 0.0
        %374 = vmatpush1.xpose.msra.mxu0 0.0
        %375 = vmatprep.subr.mxu0 0.0
        %376 = vmatpush1.xpose.msra.mxu0 0.0
        %377 = vmatprep.subr.mxu0 0.0
        %378 = vmatpush1.xpose.msra.mxu0 0.0
        %379 = vmatprep.subr.mxu0 0.0
        %380 = vmatpush1.xpose.msra.mxu0 0.0
        %381 = vmatprep.subr.mxu0 0.0
        %382 = vmatpush1.xpose.msra.mxu0 0.0
        %383 = vmatprep.subr.mxu0 0.0
        %384 = vmatpush1.xpose.msra.mxu0 0.0
        %385 = vmatprep.subr.mxu0 0.0
        %386 = vmatpush1.xpose.msra.mxu0 0.0
        %387 = vmatprep.subr.mxu0 0.0
        %388 = vmatpush1.xpose.msra.mxu0 0.0
        %389 = vmatprep.subr.mxu0 0.0
        %390 = vmatpush1.xpose.msra.mxu0 0.0
        %391 = vmatprep.subr.mxu0 0.0
        %392 = vmatpush1.xpose.msra.mxu0 0.0
        %393 = vmatprep.subr.mxu0 0.0
        %394 = vmatpush1.xpose.msra.mxu0 0.0
        %395 = vmatprep.subr.mxu0 0.0
        %396 = vmatpush1.xpose.msra.mxu0 0.0
        %397 = vmatprep.subr.mxu0 0.0
        %398 = vmatpush1.xpose.msra.mxu0 0.0
        %399 = vmatprep.subr.mxu0 0.0
        %400 = vmatpush1.xpose.msra.mxu0 0.0
        %401 = vmatprep.subr.mxu0 0.0
        %402 = vmatpush1.xpose.msra.mxu0 0.0
        %403 = vmatprep.subr.mxu0 0.0
        %404 = vmatpush1.xpose.msra.mxu0 0.0
        %405 = vmatprep.subr.mxu0 0.0
        %406 = vmatpush1.xpose.msra.mxu0 0.0
        %407 = vmatprep.mubr.f32.mxu0 0.0
        %408 = vmatmul.mubr.f32.gmra.mrb[0].mxu0 %v339
        %v409 = vpop.f32.mrb[0].mxu0
        %v410 = vadd.f32 0.0, %v409
        %v411 = vpop.f32.mrb[0].mxu0
        %412 = vdwg.mxu0
        %v413 = vsel %vm338, %v410, -inf
        %414 = vmax.xlane.f32.xlu0 %v413
        %v415 = vpop.xlane.xlu0 %414
        %v416 = vsub.f32 %v410, %v415
        %v417 = vmul.f32 %v416, 1.442695
        %v418 = vpow.pop %v417
        %v419 = vsel %vm338, %v418, 0.0
        %420 = vadd.xlane.f32.xlu0 %v419
        %v421 = vpop.xlane.xlu0 %420
        %422 = vrot.lane.b32.xlu0 %v332, 64
        %v423 = vpop.permute.xlu0 %422
        %v426 = vsel %vm338, %v418, 0
        %428 = vmatprep.subr.mxu0 0.0
        %429 = vmatpush1.msra.mxu0 %v423
        %430 = vmatprep.subr.mxu0 0.0
        %431 = vmatpush1.msra.mxu0 0.0
        %432 = vmatprep.subr.mxu0 0.0
        %433 = vmatpush1.msra.mxu0 0.0
        %434 = vmatprep.subr.mxu0 0.0
        %435 = vmatpush1.msra.mxu0 0.0
        %436 = vmatprep.subr.mxu0 0.0
        %437 = vmatpush1.msra.mxu0 0.0
        %438 = vmatprep.subr.mxu0 0.0
        %439 = vmatpush1.msra.mxu0 0.0
        %440 = vmatprep.subr.mxu0 0.0
        %441 = vmatpush1.msra.mxu0 0.0
        %442 = vmatprep.subr.mxu0 0.0
        %443 = vmatpush1.msra.mxu0 0.0
        %444 = vmatprep.subr.mxu0 0.0
        %445 = vmatpush1.msra.mxu0 0.0
        %446 = vmatprep.subr.mxu0 0.0
        %447 = vmatpush1.msra.mxu0 0.0
        %448 = vmatprep.subr.mxu0 0.0
        %449 = vmatpush1.msra.mxu0 0.0
        %450 = vmatprep.subr.mxu0 0.0
        %451 = vmatpush1.msra.mxu0 0.0
        %452 = vmatprep.subr.mxu0 0.0
        %453 = vmatpush1.msra.mxu0 0.0
        %454 = vmatprep.subr.mxu0 0.0
        %455 = vmatpush1.msra.mxu0 0.0
        %456 = vmatprep.subr.mxu0 0.0
        %457 = vmatpush1.msra.mxu0 0.0
        %458 = vmatprep.subr.mxu0 0.0
        %459 = vmatpush1.msra.mxu0 0.0
        %460 = vmatprep.subr.mxu0 0.0
        %461 = vmatpush1.msra.mxu0 0.0
        %462 = vmatprep.subr.mxu0 0.0
        %463 = vmatpush1.msra.mxu0 0.0
        %464 = vmatprep.subr.mxu0 0.0
        %465 = vmatpush1.msra.mxu0 0.0
        %466 = vmatprep.subr.mxu0 0.0
        %467 = vmatpush1.msra.mxu0 0.0
        %468 = vmatprep.subr.mxu0 0.0
        %469 = vmatpush1.msra.mxu0 0.0
        %470 = vmatprep.subr.mxu0 0.0
        %471 = vmatpush1.msra.mxu0 0.0
        %472 = vmatprep.subr.mxu0 0.0
        %473 = vmatpush1.msra.mxu0 0.0
        %474 = vmatprep.subr.mxu0 0.0
        %475 = vmatpush1.msra.mxu0 0.0
        %476 = vmatprep.subr.mxu0 0.0
        %477 = vmatpush1.msra.mxu0 0.0
        %478 = vmatprep.subr.mxu0 0.0
        %479 = vmatpush1.msra.mxu0 0.0
        %480 = vmatprep.subr.mxu0 0.0
        %481 = vmatpush1.msra.mxu0 0.0
        %482 = vmatprep.subr.mxu0 0.0
        %483 = vmatpush1.msra.mxu0 0.0
        %484 = vmatprep.subr.mxu0 0.0
        %485 = vmatpush1.msra.mxu0 0.0
        %486 = vmatprep.subr.mxu0 0.0
        %487 = vmatpush1.msra.mxu0 0.0
        %488 = vmatprep.subr.mxu0 0.0
        %489 = vmatpush1.msra.mxu0 0.0
        %490 = vmatprep.subr.mxu0 0.0
        %491 = vmatpush1.msra.mxu0 0.0
        %492 = vmatprep.mubr.f32.mxu0 0.0
        %493 = vmatmul.mubr.f32.gmra.mrb[0].mxu0 %v426
        %v494 = vpop.f32.mrb[0].mxu0
        %v495 = vadd.f32 0.0, %v494
        %v496 = vpop.f32.mrb[0].mxu0
        %497 = vdwg.mxu0
        %v498 = vrcp.pop %v421
        %v499 = vmul.f32 %v495, %v498
        %500 = vrot.lane.b32.xlu0 %v332, 120
        %v501 = vpop.permute.xlu0 %500
        %502 = vrot.lane.b32.xlu0 %v332, 88
        %v503 = vpop.permute.xlu0 %502
        %v504 = vsel %vm338, %v501, 0
        %v506 = vsel %vm338, %v503, 0
        %508 = vmatprep.subr.mxu0 0.0
        %509 = vmatpush1.xpose.msra.mxu0 %v506
        %510 = vmatprep.subr.mxu0 0.0
        %511 = vmatpush1.xpose.msra.mxu0 0.0
        %512 = vmatprep.subr.mxu0 0.0
        %513 = vmatpush1.xpose.msra.mxu0 0.0
        %514 = vmatprep.subr.mxu0 0.0
        %515 = vmatpush1.xpose.msra.mxu0 0.0
        %516 = vmatprep.subr.mxu0 0.0
        %517 = vmatpush1.xpose.msra.mxu0 0.0
        %518 = vmatprep.subr.mxu0 0.0
        %519 = vmatpush1.xpose.msra.mxu0 0.0
        %520 = vmatprep.subr.mxu0 0.0
        %521 = vmatpush1.xpose.msra.mxu0 0.0
        %522 = vmatprep.subr.mxu0 0.0
        %523 = vmatpush1.xpose.msra.mxu0 0.0
        %524 = vmatprep.subr.mxu0 0.0
        %525 = vmatpush1.xpose.msra.mxu0 0.0
        %526 = vmatprep.subr.mxu0 0.0
        %527 = vmatpush1.xpose.msra.mxu0 0.0
        %528 = vmatprep.subr.mxu0 0.0
        %529 = vmatpush1.xpose.msra.mxu0 0.0
        %530 = vmatprep.subr.mxu0 0.0
        %531 = vmatpush1.xpose.msra.mxu0 0.0
        %532 = vmatprep.subr.mxu0 0.0
        %533 = vmatpush1.xpose.msra.mxu0 0.0
        %534 = vmatprep.subr.mxu0 0.0
        %535 = vmatpush1.xpose.msra.mxu0 0.0
        %536 = vmatprep.subr.mxu0 0.0
        %537 = vmatpush1.xpose.msra.mxu0 0.0
        %538 = vmatprep.subr.mxu0 0.0
        %539 = vmatpush1.xpose.msra.mxu0 0.0
        %540 = vmatprep.subr.mxu0 0.0
        %541 = vmatpush1.xpose.msra.mxu0 0.0
        %542 = vmatprep.subr.mxu0 0.0
        %543 = vmatpush1.xpose.msra.mxu0 0.0
        %544 = vmatprep.subr.mxu0 0.0
        %545 = vmatpush1.xpose.msra.mxu0 0.0
        %546 = vmatprep.subr.mxu0 0.0
        %547 = vmatpush1.xpose.msra.mxu0 0.0
        %548 = vmatprep.subr.mxu0 0.0
        %549 = vmatpush1.xpose.msra.mxu0 0.0
        %550 = vmatprep.subr.mxu0 0.0
        %551 = vmatpush1.xpose.msra.mxu0 0.0
        %552 = vmatprep.subr.mxu0 0.0
        %553 = vmatpush1.xpose.msra.mxu0 0.0
        %554 = vmatprep.subr.mxu0 0.0
        %555 = vmatpush1.xpose.msra.mxu0 0.0
        %556 = vmatprep.subr.mxu0 0.0
        %557 = vmatpush1.xpose.msra.mxu0 0.0
        %558 = vmatprep.subr.mxu0 0.0
        %559 = vmatpush1.xpose.msra.mxu0 0.0
        %560 = vmatprep.subr.mxu0 0.0
        %561 = vmatpush1.xpose.msra.mxu0 0.0
        %562 = vmatprep.subr.mxu0 0.0
        %563 = vmatpush1.xpose.msra.mxu0 0.0
        %564 = vmatprep.subr.mxu0 0.0
        %565 = vmatpush1.xpose.msra.mxu0 0.0
        %566 = vmatprep.subr.mxu0 0.0
        %567 = vmatpush1.xpose.msra.mxu0 0.0
        %568 = vmatprep.subr.mxu0 0.0
        %569 = vmatpush1.xpose.msra.mxu0 0.0
        %570 = vmatprep.subr.mxu0 0.0
        %571 = vmatpush1.xpose.msra.mxu0 0.0
        %572 = vmatprep.mubr.f32.mxu0 0.0
        %573 = vmatmul.mubr.f32.gmra.mrb[0].mxu0 %v504
        %v574 = vpop.f32.mrb[0].mxu0
        %v575 = vadd.f32 0.0, %v574
        %v576 = vpop.f32.mrb[0].mxu0
        %577 = vdwg.mxu0
        %v578 = vsel %vm338, %v575, -inf
        %579 = vmax.xlane.f32.xlu0 %v578
        %v580 = vpop.xlane.xlu0 %579
        %v581 = vsub.f32 %v575, %v580
        %v582 = vmul.f32 %v581, 1.442695
        %v583 = vpow.pop %v582
        %v584 = vsel %vm338, %v583, 0.0
        %585 = vadd.xlane.f32.xlu0 %v584
        %v586 = vpop.xlane.xlu0 %585
        %587 = vrot.lane.b32.xlu0 %v332, 56
        %v588 = vpop.permute.xlu0 %587
        %v591 = vsel %vm338, %v583, 0
        %593 = vmatprep.subr.mxu0 0.0
        %594 = vmatpush1.msra.mxu0 %v588
        %595 = vmatprep.subr.mxu0 0.0
        %596 = vmatpush1.msra.mxu0 0.0
        %597 = vmatprep.subr.mxu0 0.0
        %598 = vmatpush1.msra.mxu0 0.0
        %599 = vmatprep.subr.mxu0 0.0
        %600 = vmatpush1.msra.mxu0 0.0
        %601 = vmatprep.subr.mxu0 0.0
        %602 = vmatpush1.msra.mxu0 0.0
        %603 = vmatprep.subr.mxu0 0.0
        %604 = vmatpush1.msra.mxu0 0.0
        %605 = vmatprep.subr.mxu0 0.0
        %606 = vmatpush1.msra.mxu0 0.0
        %607 = vmatprep.subr.mxu0 0.0
        %608 = vmatpush1.msra.mxu0 0.0
        %609 = vmatprep.subr.mxu0 0.0
        %610 = vmatpush1.msra.mxu0 0.0
        %611 = vmatprep.subr.mxu0 0.0
        %612 = vmatpush1.msra.mxu0 0.0
        %613 = vmatprep.subr.mxu0 0.0
        %614 = vmatpush1.msra.mxu0 0.0
        %615 = vmatprep.subr.mxu0 0.0
        %616 = vmatpush1.msra.mxu0 0.0
        %617 = vmatprep.subr.mxu0 0.0
        %618 = vmatpush1.msra.mxu0 0.0
        %619 = vmatprep.subr.mxu0 0.0
        %620 = vmatpush1.msra.mxu0 0.0
        %621 = vmatprep.subr.mxu0 0.0
        %622 = vmatpush1.msra.mxu0 0.0
        %623 = vmatprep.subr.mxu0 0.0
        %624 = vmatpush1.msra.mxu0 0.0
        %625 = vmatprep.subr.mxu0 0.0
        %626 = vmatpush1.msra.mxu0 0.0
        %627 = vmatprep.subr.mxu0 0.0
        %628 = vmatpush1.msra.mxu0 0.0
        %629 = vmatprep.subr.mxu0 0.0
        %630 = vmatpush1.msra.mxu0 0.0
        %631 = vmatprep.subr.mxu0 0.0
        %632 = vmatpush1.msra.mxu0 0.0
        %633 = vmatprep.subr.mxu0 0.0
        %634 = vmatpush1.msra.mxu0 0.0
        %635 = vmatprep.subr.mxu0 0.0
        %636 = vmatpush1.msra.mxu0 0.0
        %637 = vmatprep.subr.mxu0 0.0
        %638 = vmatpush1.msra.mxu0 0.0
        %639 = vmatprep.subr.mxu0 0.0
        %640 = vmatpush1.msra.mxu0 0.0
        %641 = vmatprep.subr.mxu0 0.0
        %642 = vmatpush1.msra.mxu0 0.0
        %643 = vmatprep.subr.mxu0 0.0
        %644 = vmatpush1.msra.mxu0 0.0
        %645 = vmatprep.subr.mxu0 0.0
        %646 = vmatpush1.msra.mxu0 0.0
        %647 = vmatprep.subr.mxu0 0.0
        %648 = vmatpush1.msra.mxu0 0.0
        %649 = vmatprep.subr.mxu0 0.0
        %650 = vmatpush1.msra.mxu0 0.0
        %651 = vmatprep.subr.mxu0 0.0
        %652 = vmatpush1.msra.mxu0 0.0
        %653 = vmatprep.subr.mxu0 0.0
        %654 = vmatpush1.msra.mxu0 0.0
        %655 = vmatprep.subr.mxu0 0.0
        %656 = vmatpush1.msra.mxu0 0.0
        %657 = vmatprep.mubr.f32.mxu0 0.0
        %658 = vmatmul.mubr.f32.gmra.mrb[0].mxu0 %v591
        %v659 = vpop.f32.mrb[0].mxu0
        %v660 = vadd.f32 0.0, %v659
        %v661 = vpop.f32.mrb[0].mxu0
        %662 = vdwg.mxu0
        %v663 = vrcp.pop %v586
        %v664 = vmul.f32 %v660, %v663
        %665 = vrot.lane.b32.xlu0 %v332, 112
        %v666 = vpop.permute.xlu0 %665
        %667 = vrot.lane.b32.xlu0 %v332, 80
        %v668 = vpop.permute.xlu0 %667
        %v669 = vsel %vm338, %v666, 0
        %v671 = vsel %vm338, %v668, 0
        %673 = vmatprep.subr.mxu0 0.0
        %674 = vmatpush1.xpose.msra.mxu0 %v671
        %675 = vmatprep.subr.mxu0 0.0
        %676 = vmatpush1.xpose.msra.mxu0 0.0
        %677 = vmatprep.subr.mxu0 0.0
        %678 = vmatpush1.xpose.msra.mxu0 0.0
        %679 = vmatprep.subr.mxu0 0.0
        %680 = vmatpush1.xpose.msra.mxu0 0.0
        %681 = vmatprep.subr.mxu0 0.0
        %682 = vmatpush1.xpose.msra.mxu0 0.0
        %683 = vmatprep.subr.mxu0 0.0
        %684 = vmatpush1.xpose.msra.mxu0 0.0
        %685 = vmatprep.subr.mxu0 0.0
        %686 = vmatpush1.xpose.msra.mxu0 0.0
        %687 = vmatprep.subr.mxu0 0.0
        %688 = vmatpush1.xpose.msra.mxu0 0.0
        %689 = vmatprep.subr.mxu0 0.0
        %690 = vmatpush1.xpose.msra.mxu0 0.0
        %691 = vmatprep.subr.mxu0 0.0
        %692 = vmatpush1.xpose.msra.mxu0 0.0
        %693 = vmatprep.subr.mxu0 0.0
        %694 = vmatpush1.xpose.msra.mxu0 0.0
        %695 = vmatprep.subr.mxu0 0.0
        %696 = vmatpush1.xpose.msra.mxu0 0.0
        %697 = vmatprep.subr.mxu0 0.0
        %698 = vmatpush1.xpose.msra.mxu0 0.0
        %699 = vmatprep.subr.mxu0 0.0
        %700 = vmatpush1.xpose.msra.mxu0 0.0
        %701 = vmatprep.subr.mxu0 0.0
        %702 = vmatpush1.xpose.msra.mxu0 0.0
        %703 = vmatprep.subr.mxu0 0.0
        %704 = vmatpush1.xpose.msra.mxu0 0.0
        %705 = vmatprep.subr.mxu0 0.0
        %706 = vmatpush1.xpose.msra.mxu0 0.0
        %707 = vmatprep.subr.mxu0 0.0
        %708 = vmatpush1.xpose.msra.mxu0 0.0
        %709 = vmatprep.subr.mxu0 0.0
        %710 = vmatpush1.xpose.msra.mxu0 0.0
        %711 = vmatprep.subr.mxu0 0.0
        %712 = vmatpush1.xpose.msra.mxu0 0.0
        %713 = vmatprep.subr.mxu0 0.0
        %714 = vmatpush1.xpose.msra.mxu0 0.0
        %715 = vmatprep.subr.mxu0 0.0
        %716 = vmatpush1.xpose.msra.mxu0 0.0
        %717 = vmatprep.subr.mxu0 0.0
        %718 = vmatpush1.xpose.msra.mxu0 0.0
        %719 = vmatprep.subr.mxu0 0.0
        %720 = vmatpush1.xpose.msra.mxu0 0.0
        %721 = vmatprep.subr.mxu0 0.0
        %722 = vmatpush1.xpose.msra.mxu0 0.0
        %723 = vmatprep.subr.mxu0 0.0
        %724 = vmatpush1.xpose.msra.mxu0 0.0
        %725 = vmatprep.subr.mxu0 0.0
        %726 = vmatpush1.xpose.msra.mxu0 0.0
        %727 = vmatprep.subr.mxu0 0.0
        %728 = vmatpush1.xpose.msra.mxu0 0.0
        %729 = vmatprep.subr.mxu0 0.0
        %730 = vmatpush1.xpose.msra.mxu0 0.0
        %731 = vmatprep.subr.mxu0 0.0
        %732 = vmatpush1.xpose.msra.mxu0 0.0
        %733 = vmatprep.subr.mxu0 0.0
        %734 = vmatpush1.xpose.msra.mxu0 0.0
        %735 = vmatprep.subr.mxu0 0.0
        %736 = vmatpush1.xpose.msra.mxu0 0.0
        %737 = vmatprep.mubr.f32.mxu0 0.0
        %738 = vmatmul.mubr.f32.gmra.mrb[0].mxu0 %v669
        %v739 = vpop.f32.mrb[0].mxu0
        %v740 = vadd.f32 0.0, %v739
        %v741 = vpop.f32.mrb[0].mxu0
        %742 = vdwg.mxu0
        %v743 = vsel %vm338, %v740, -inf
        %744 = vmax.xlane.f32.xlu0 %v743
        %v745 = vpop.xlane.xlu0 %744
        %v746 = vsub.f32 %v740, %v745
        %v747 = vmul.f32 %v746, 1.442695
        %v748 = vpow.pop %v747
        %v749 = vsel %vm338, %v748, 0.0
        %750 = vadd.xlane.f32.xlu0 %v749
        %v751 = vpop.xlane.xlu0 %750
        %752 = vrot.lane.b32.xlu0 %v332, 48
        %v753 = vpop.permute.xlu0 %752
        %v756 = vsel %vm338, %v748, 0
        %758 = vmatprep.subr.mxu0 0.0
        %759 = vmatpush1.msra.mxu0 %v753
        %760 = vmatprep.subr.mxu0 0.0
        %761 = vmatpush1.msra.mxu0 0.0
        %762 = vmatprep.subr.mxu0 0.0
        %763 = vmatpush1.msra.mxu0 0.0
        %764 = vmatprep.subr.mxu0 0.0
        %765 = vmatpush1.msra.mxu0 0.0
        %766 = vmatprep.subr.mxu0 0.0
        %767 = vmatpush1.msra.mxu0 0.0
        %768 = vmatprep.subr.mxu0 0.0
        %769 = vmatpush1.msra.mxu0 0.0
        %770 = vmatprep.subr.mxu0 0.0
        %771 = vmatpush1.msra.mxu0 0.0
        %772 = vmatprep.subr.mxu0 0.0
        %773 = vmatpush1.msra.mxu0 0.0
        %774 = vmatprep.subr.mxu0 0.0
        %775 = vmatpush1.msra.mxu0 0.0
        %776 = vmatprep.subr.mxu0 0.0
        %777 = vmatpush1.msra.mxu0 0.0
        %778 = vmatprep.subr.mxu0 0.0
        %779 = vmatpush1.msra.mxu0 0.0
        %780 = vmatprep.subr.mxu0 0.0
        %781 = vmatpush1.msra.mxu0 0.0
        %782 = vmatprep.subr.mxu0 0.0
        %783 = vmatpush1.msra.mxu0 0.0
        %784 = vmatprep.subr.mxu0 0.0
        %785 = vmatpush1.msra.mxu0 0.0
        %786 = vmatprep.subr.mxu0 0.0
        %787 = vmatpush1.msra.mxu0 0.0
        %788 = vmatprep.subr.mxu0 0.0
        %789 = vmatpush1.msra.mxu0 0.0
        %790 = vmatprep.subr.mxu0 0.0
        %791 = vmatpush1.msra.mxu0 0.0
        %792 = vmatprep.subr.mxu0 0.0
        %793 = vmatpush1.msra.mxu0 0.0
        %794 = vmatprep.subr.mxu0 0.0
        %795 = vmatpush1.msra.mxu0 0.0
        %796 = vmatprep.subr.mxu0 0.0
        %797 = vmatpush1.msra.mxu0 0.0
        %798 = vmatprep.subr.mxu0 0.0
        %799 = vmatpush1.msra.mxu0 0.0
        %800 = vmatprep.subr.mxu0 0.0
        %801 = vmatpush1.msra.mxu0 0.0
        %802 = vmatprep.subr.mxu0 0.0
        %803 = vmatpush1.msra.mxu0 0.0
        %804 = vmatprep.subr.mxu0 0.0
        %805 = vmatpush1.msra.mxu0 0.0
        %806 = vmatprep.subr.mxu0 0.0
        %807 = vmatpush1.msra.mxu0 0.0
        %808 = vmatprep.subr.mxu0 0.0
        %809 = vmatpush1.msra.mxu0 0.0
        %810 = vmatprep.subr.mxu0 0.0
        %811 = vmatpush1.msra.mxu0 0.0
        %812 = vmatprep.subr.mxu0 0.0
        %813 = vmatpush1.msra.mxu0 0.0
        %814 = vmatprep.subr.mxu0 0.0
        %815 = vmatpush1.msra.mxu0 0.0
        %816 = vmatprep.subr.mxu0 0.0
        %817 = vmatpush1.msra.mxu0 0.0
        %818 = vmatprep.subr.mxu0 0.0
        %819 = vmatpush1.msra.mxu0 0.0
        %820 = vmatprep.subr.mxu0 0.0
        %821 = vmatpush1.msra.mxu0 0.0
        %822 = vmatprep.mubr.f32.mxu0 0.0
        %823 = vmatmul.mubr.f32.gmra.mrb[0].mxu0 %v756
        %v824 = vpop.f32.mrb[0].mxu0
        %v825 = vadd.f32 0.0, %v824
        %v826 = vpop.f32.mrb[0].mxu0
        %827 = vdwg.mxu0
        %v828 = vrcp.pop %v751
        %v829 = vmul.f32 %v825, %v828
        %830 = vrot.lane.b32.xlu0 %v332, 104
        %v831 = vpop.permute.xlu0 %830
        %832 = vrot.lane.b32.xlu0 %v332, 72
        %v833 = vpop.permute.xlu0 %832
        %v834 = vsel %vm338, %v831, 0
        %v836 = vsel %vm338, %v833, 0
        %838 = vmatprep.subr.mxu0 0.0
        %839 = vmatpush1.xpose.msra.mxu0 %v836
        %840 = vmatprep.subr.mxu0 0.0
        %841 = vmatpush1.xpose.msra.mxu0 0.0
        %842 = vmatprep.subr.mxu0 0.0
        %843 = vmatpush1.xpose.msra.mxu0 0.0
        %844 = vmatprep.subr.mxu0 0.0
        %845 = vmatpush1.xpose.msra.mxu0 0.0
        %846 = vmatprep.subr.mxu0 0.0
        %847 = vmatpush1.xpose.msra.mxu0 0.0
        %848 = vmatprep.subr.mxu0 0.0
        %849 = vmatpush1.xpose.msra.mxu0 0.0
        %850 = vmatprep.subr.mxu0 0.0
        %851 = vmatpush1.xpose.msra.mxu0 0.0
        %852 = vmatprep.subr.mxu0 0.0
        %853 = vmatpush1.xpose.msra.mxu0 0.0
        %854 = vmatprep.subr.mxu0 0.0
        %855 = vmatpush1.xpose.msra.mxu0 0.0
        %856 = vmatprep.subr.mxu0 0.0
        %857 = vmatpush1.xpose.msra.mxu0 0.0
        %858 = vmatprep.subr.mxu0 0.0
        %859 = vmatpush1.xpose.msra.mxu0 0.0
        %860 = vmatprep.subr.mxu0 0.0
        %861 = vmatpush1.xpose.msra.mxu0 0.0
        %862 = vmatprep.subr.mxu0 0.0
        %863 = vmatpush1.xpose.msra.mxu0 0.0
        %864 = vmatprep.subr.mxu0 0.0
        %865 = vmatpush1.xpose.msra.mxu0 0.0
        %866 = vmatprep.subr.mxu0 0.0
        %867 = vmatpush1.xpose.msra.mxu0 0.0
        %868 = vmatprep.subr.mxu0 0.0
        %869 = vmatpush1.xpose.msra.mxu0 0.0
        %870 = vmatprep.subr.mxu0 0.0
        %871 = vmatpush1.xpose.msra.mxu0 0.0
        %872 = vmatprep.subr.mxu0 0.0
        %873 = vmatpush1.xpose.msra.mxu0 0.0
        %874 = vmatprep.subr.mxu0 0.0
        %875 = vmatpush1.xpose.msra.mxu0 0.0
        %876 = vmatprep.subr.mxu0 0.0
        %877 = vmatpush1.xpose.msra.mxu0 0.0
        %878 = vmatprep.subr.mxu0 0.0
        %879 = vmatpush1.xpose.msra.mxu0 0.0
        %880 = vmatprep.subr.mxu0 0.0
        %881 = vmatpush1.xpose.msra.mxu0 0.0
        %882 = vmatprep.subr.mxu0 0.0
        %883 = vmatpush1.xpose.msra.mxu0 0.0
        %884 = vmatprep.subr.mxu0 0.0
        %885 = vmatpush1.xpose.msra.mxu0 0.0
        %886 = vmatprep.subr.mxu0 0.0
        %887 = vmatpush1.xpose.msra.mxu0 0.0
        %888 = vmatprep.subr.mxu0 0.0
        %889 = vmatpush1.xpose.msra.mxu0 0.0
        %890 = vmatprep.subr.mxu0 0.0
        %891 = vmatpush1.xpose.msra.mxu0 0.0
        %892 = vmatprep.subr.mxu0 0.0
        %893 = vmatpush1.xpose.msra.mxu0 0.0
        %894 = vmatprep.subr.mxu0 0.0
        %895 = vmatpush1.xpose.msra.mxu0 0.0
        %896 = vmatprep.subr.mxu0 0.0
        %897 = vmatpush1.xpose.msra.mxu0 0.0
        %898 = vmatprep.subr.mxu0 0.0
        %899 = vmatpush1.xpose.msra.mxu0 0.0
        %900 = vmatprep.subr.mxu0 0.0
        %901 = vmatpush1.xpose.msra.mxu0 0.0
        %902 = vmatprep.mubr.f32.mxu0 0.0
        %903 = vmatmul.mubr.f32.gmra.mrb[0].mxu0 %v834
        %v904 = vpop.f32.mrb[0].mxu0
        %v905 = vadd.f32 0.0, %v904
        %v906 = vpop.f32.mrb[0].mxu0
        %907 = vdwg.mxu0
        %v908 = vsel %vm338, %v905, -inf
        %909 = vmax.xlane.f32.xlu0 %v908
        %v910 = vpop.xlane.xlu0 %909
        %v911 = vsub.f32 %v905, %v910
        %v912 = vmul.f32 %v911, 1.442695
        %v913 = vpow.pop %v912
        %v914 = vsel %vm338, %v913, 0.0
        %915 = vadd.xlane.f32.xlu0 %v914
        %v916 = vpop.xlane.xlu0 %915
        %917 = vrot.lane.b32.xlu0 %v332, 40
        %v918 = vpop.permute.xlu0 %917
        %v921 = vsel %vm338, %v913, 0
        %923 = vmatprep.subr.mxu0 0.0
        %924 = vmatpush1.msra.mxu0 %v918
        %925 = vmatprep.subr.mxu0 0.0
        %926 = vmatpush1.msra.mxu0 0.0
        %927 = vmatprep.subr.mxu0 0.0
        %928 = vmatpush1.msra.mxu0 0.0
        %929 = vmatprep.subr.mxu0 0.0
        %930 = vmatpush1.msra.mxu0 0.0
        %931 = vmatprep.subr.mxu0 0.0
        %932 = vmatpush1.msra.mxu0 0.0
        %933 = vmatprep.subr.mxu0 0.0
        %934 = vmatpush1.msra.mxu0 0.0
        %935 = vmatprep.subr.mxu0 0.0
        %936 = vmatpush1.msra.mxu0 0.0
        %937 = vmatprep.subr.mxu0 0.0
        %938 = vmatpush1.msra.mxu0 0.0
        %939 = vmatprep.subr.mxu0 0.0
        %940 = vmatpush1.msra.mxu0 0.0
        %941 = vmatprep.subr.mxu0 0.0
        %942 = vmatpush1.msra.mxu0 0.0
        %943 = vmatprep.subr.mxu0 0.0
        %944 = vmatpush1.msra.mxu0 0.0
        %945 = vmatprep.subr.mxu0 0.0
        %946 = vmatpush1.msra.mxu0 0.0
        %947 = vmatprep.subr.mxu0 0.0
        %948 = vmatpush1.msra.mxu0 0.0
        %949 = vmatprep.subr.mxu0 0.0
        %950 = vmatpush1.msra.mxu0 0.0
        %951 = vmatprep.subr.mxu0 0.0
        %952 = vmatpush1.msra.mxu0 0.0
        %953 = vmatprep.subr.mxu0 0.0
        %954 = vmatpush1.msra.mxu0 0.0
        %955 = vmatprep.subr.mxu0 0.0
        %956 = vmatpush1.msra.mxu0 0.0
        %957 = vmatprep.subr.mxu0 0.0
        %958 = vmatpush1.msra.mxu0 0.0
        %959 = vmatprep.subr.mxu0 0.0
        %960 = vmatpush1.msra.mxu0 0.0
        %961 = vmatprep.subr.mxu0 0.0
        %962 = vmatpush1.msra.mxu0 0.0
        %963 = vmatprep.subr.mxu0 0.0
        %964 = vmatpush1.msra.mxu0 0.0
        %965 = vmatprep.subr.mxu0 0.0
        %966 = vmatpush1.msra.mxu0 0.0
        %967 = vmatprep.subr.mxu0 0.0
        %968 = vmatpush1.msra.mxu0 0.0
        %969 = vmatprep.subr.mxu0 0.0
        %970 = vmatpush1.msra.mxu0 0.0
        %971 = vmatprep.subr.mxu0 0.0
        %972 = vmatpush1.msra.mxu0 0.0
        %973 = vmatprep.subr.mxu0 0.0
        %974 = vmatpush1.msra.mxu0 0.0
        %975 = vmatprep.subr.mxu0 0.0
        %976 = vmatpush1.msra.mxu0 0.0
        %977 = vmatprep.subr.mxu0 0.0
        %978 = vmatpush1.msra.mxu0 0.0
        %979 = vmatprep.subr.mxu0 0.0
        %980 = vmatpush1.msra.mxu0 0.0
        %981 = vmatprep.subr.mxu0 0.0
        %982 = vmatpush1.msra.mxu0 0.0
        %983 = vmatprep.subr.mxu0 0.0
        %984 = vmatpush1.msra.mxu0 0.0
        %985 = vmatprep.subr.mxu0 0.0
        %986 = vmatpush1.msra.mxu0 0.0
        %987 = vmatprep.mubr.f32.mxu0 0.0
        %988 = vmatmul.mubr.f32.gmra.mrb[0].mxu0 %v921
        %v989 = vpop.f32.mrb[0].mxu0
        %v990 = vadd.f32 0.0, %v989
        %v991 = vpop.f32.mrb[0].mxu0
        %992 = vdwg.mxu0
        %v993 = vrcp.pop %v916
        %v994 = vmul.f32 %v990, %v993
        %996 = vrot.lane.b32.xlu0 %v664, 8
        %v997 = vpop.permute.xlu0 %996
        %1000 = vrot.lane.b32.xlu0 %v829, 16
        %v1001 = vpop.permute.xlu0 %1000
        %1004 = vrot.lane.b32.xlu0 %v994, 24
        %v1005 = vpop.permute.xlu0 %1004
        %v1007 = vsel %vm338, %v499, %v997
        %vm1008 = vcmask 130048
        %v1009 = vsel %vm1008, %v1007, %v1001
        %vm1010 = vcmask 195584
        %v1011 = vsel %vm1010, %v1009, %v1005
        %s1012 = scalar_lea.vmem [#allocation7], %s255
        %v1013 = vld [vmem:[%s1012] sm:$0xff]
        %v1014 = vld [vmem:[%s1012 + $0x8] sm:$0xff]
        %v1015 = vld [vmem:[%s1012 + $0x10] sm:$0xff]
        %v1016 = vld [vmem:[%s1012 + $0x18] sm:$0xff]
        %v1018 = vsel %vm261, %v1011, 0
        %1020 = vmatprep.subr.mxu0 0.0
        %1021 = vmatpush1.msra.mxu0 %v1013
        %1022 = vmatprep.subr.mxu0 0.0
        %1023 = vmatpush1.msra.mxu0 %v1014
        %1024 = vmatprep.subr.mxu0 0.0
        %1025 = vmatpush1.msra.mxu0 %v1015
        %1026 = vmatprep.subr.mxu0 0.0
        %1027 = vmatpush1.msra.mxu0 %v1016
        %1028 = vmatprep.subr.mxu0 0.0
        %1029 = vmatpush1.msra.mxu0 0.0
        %1030 = vmatprep.subr.mxu0 0.0
        %1031 = vmatpush1.msra.mxu0 0.0
        %1032 = vmatprep.subr.mxu0 0.0
        %1033 = vmatpush1.msra.mxu0 0.0
        %1034 = vmatprep.subr.mxu0 0.0
        %1035 = vmatpush1.msra.mxu0 0.0
        %1036 = vmatprep.subr.mxu0 0.0
        %1037 = vmatpush1.msra.mxu0 0.0
        %1038 = vmatprep.subr.mxu0 0.0
        %1039 = vmatpush1.msra.mxu0 0.0
        %1040 = vmatprep.subr.mxu0 0.0
        %1041 = vmatpush1.msra.mxu0 0.0
        %1042 = vmatprep.subr.mxu0 0.0
        %1043 = vmatpush1.msra.mxu0 0.0
        %1044 = vmatprep.subr.mxu0 0.0
        %1045 = vmatpush1.msra.mxu0 0.0
        %1046 = vmatprep.subr.mxu0 0.0
        %1047 = vmatpush1.msra.mxu0 0.0
        %1048 = vmatprep.subr.mxu0 0.0
        %1049 = vmatpush1.msra.mxu0 0.0
        %1050 = vmatprep.subr.mxu0 0.0
        %1051 = vmatpush1.msra.mxu0 0.0
        %1052 = vmatprep.subr.mxu0 0.0
        %1053 = vmatpush1.msra.mxu0 0.0
        %1054 = vmatprep.subr.mxu0 0.0
        %1055 = vmatpush1.msra.mxu0 0.0
        %1056 = vmatprep.subr.mxu0 0.0
        %1057 = vmatpush1.msra.mxu0 0.0
        %1058 = vmatprep.subr.mxu0 0.0
        %1059 = vmatpush1.msra.mxu0 0.0
        %1060 = vmatprep.subr.mxu0 0.0
        %1061 = vmatpush1.msra.mxu0 0.0
        %1062 = vmatprep.subr.mxu0 0.0
        %1063 = vmatpush1.msra.mxu0 0.0
        %1064 = vmatprep.subr.mxu0 0.0
        %1065 = vmatpush1.msra.mxu0 0.0
        %1066 = vmatprep.subr.mxu0 0.0
        %1067 = vmatpush1.msra.mxu0 0.0
        %1068 = vmatprep.subr.mxu0 0.0
        %1069 = vmatpush1.msra.mxu0 0.0
        %1070 = vmatprep.subr.mxu0 0.0
        %1071 = vmatpush1.msra.mxu0 0.0
        %1072 = vmatprep.subr.mxu0 0.0
        %1073 = vmatpush1.msra.mxu0 0.0
        %1074 = vmatprep.subr.mxu0 0.0
        %1075 = vmatpush1.msra.mxu0 0.0
        %1076 = vmatprep.subr.mxu0 0.0
        %1077 = vmatpush1.msra.mxu0 0.0
        %1078 = vmatprep.subr.mxu0 0.0
        %1079 = vmatpush1.msra.mxu0 0.0
        %1080 = vmatprep.subr.mxu0 0.0
        %1081 = vmatpush1.msra.mxu0 0.0
        %1082 = vmatprep.subr.mxu0 0.0
        %1083 = vmatpush1.msra.mxu0 0.0
        %1084 = vmatprep.mubr.f32.mxu0 0.0
        %1085 = vmatmul.mubr.f32.gmra.mrb[0].mxu0 %v1018
        %v1086 = vpop.f32.mrb[0].mxu0
        %v1087 = vadd.f32 0.0, %v1086
        %v1088 = vpop.f32.mrb[0].mxu0
        %1089 = vdwg.mxu0
        %p1090 = scmp.eq.s32.totalorder %s27, 0
        // Predicated region
        $region49: #{tpu_custom_call.1} parent=35 // pred_check
          %p1091 = pneg %p1090
        $region50: #{tpu_custom_call.1} parent=35 // pred_check_branch
          %1093 = sbr.rel (%p1091) target = $region52
        $region51: #{tpu_custom_call.1} parent=35 // pred_region
          %v1094 = vld [vmem:[%s3] sm:$0x1]
          %v1096 = vlaneseq
          %v1097 = vshrl.u32 %v1096, 7
          %v1098 = vsub.s32 0, %v1097
          %v1099 = vrot.slane %v1094, %v1098
          %v1101 = vadd.f32 %v1087, %v1099
          %1102 = vst.msk [vmem:[%s253] sm:$0xff] %vm261, %v1101
        $region52: #{tpu_custom_call.1} parent=35 // pred_fallthru
          _
        %p1103 = scmp.gt.s32.totalorder %s27, 0
        // Predicated region
        $region53: #{tpu_custom_call.1} parent=35 // pred_check
          %p1104 = pneg %p1103
        $region54: #{tpu_custom_call.1} parent=35 // pred_check_branch
          %1106 = sbr.rel (%p1104) target = $region56
        $region55: #{tpu_custom_call.1} parent=35 // pred_region
          %v1107 = vld [vmem:[%s253] sm:$0xff]
          %v1108 = vadd.f32 %v1107, %v1087
          %1109 = vst.msk [vmem:[%s253] sm:$0xff] %vm261, %v1108
        $region56: #{tpu_custom_call.1} parent=35 // pred_fallthru
          _
        %s1110 = sand.u32 %s131, 1
        %s1111 = scalar_lea.sflag [#allocation4], %s1110
        %s1112 = sand.u32 %s131, 1
        %s1113 = smul.addr %s1112, 8
        %s1114 = scalar_lea.vmem [#allocation8], %s1113
        // Predicated region
        $region57: #{tpu_custom_call.1} parent=35 // pred_check
          %p1115 = pneg %p141
        $region58: #{tpu_custom_call.1} parent=35 // pred_check_branch
          %1117 = sbr.rel (%p1115) target = $region60
        $region59: #{tpu_custom_call.1} parent=35 // pred_region
          %s1119 = ssub.s32 128, 128
          %1120 = vsyncadd %s1111, %s1119
          %s1121 = smul.addr %s26, 128
          %s1122 = scalar_lea.hbm %s4, %s1121
          %s1124 = sshll.u32 %s1114, 4
          %s1125 = int_to_ptr.vmem [resolvable:$true] %s1124
          %1127 = dma.vmem_to_hbm [thread:$0]  %s1125, 128, %s1122, %s1111
        $region60: #{tpu_custom_call.1} parent=35 // pred_fallthru
          _
      $region36: #{tpu_custom_call.1} parent=5 // pred_fallthru
        _
      %p1128 = scmp.le.s32.totalorder 2, %s17
      // Predicated region
      $region61: #{tpu_custom_call.1} parent=5 // pred_check
        %p1129 = pneg %p1128
      $region62: #{tpu_custom_call.1} parent=5 // pred_check_branch
        %1131 = sbr.rel (%p1129) target = $region64
      $region63: #{tpu_custom_call.1} parent=5 // pred_region
        %s1132 = ssub.s32 %s17, 2
        // Predicated region
        $region65: #{tpu_custom_call.1} parent=63 // pred_check
          %p1133 = pneg %p147
        $region66: #{tpu_custom_call.1} parent=63 // pred_check_branch
          %1135 = sbr.rel (%p1133) target = $region68
        $region67: #{tpu_custom_call.1} parent=63 // pred_region
          %s1136 = sand.u32 %s132, 1
          %s1137 = scalar_lea.sflag [#allocation4], %s1136
          %s1138 = sand.u32 %s132, 1
          %s1139 = smul.addr %s1138, 8
          %s1140 = scalar_lea.vmem [#allocation8], %s1139
          %1141 = dma.done %s1137, 128
        $region68: #{tpu_custom_call.1} parent=63 // pred_fallthru
          _
      $region64: #{tpu_custom_call.1} parent=5 // pred_fallthru
        _
    $region6: #{tpu_custom_call.1} parent=1 // loop_footer
      %s21 = sadd.s32 1, %s17
    $region7: #{tpu_custom_call.1} parent=1 // loop_footer_branch
      %16 = sbr.rel target = $region3
    $region8: #{tpu_custom_call.1} parent=1 // loop_exit
      _
    %1142 = vsyncpa [#allocation3], 1
    %s1143 = scalar_lea.sflag [#allocation3], 1
    %1144 = vsyncpa %s1143, 1
    %1145 = vsyncpa [#allocation6], 1
    %1146 = vsyncpa [#allocation4], 1
    %s1147 = scalar_lea.sflag [#allocation4], 1
    %1148 = vsyncpa %s1147, 1

</llo_original>
